<compile_context>
chip_gen: v7x
topology: tpu7x:2x2x1
jax: 0.10.0
libtpu: 0.0.40
codegen_flags: <defaults>
</compile_context>

<pallas_src>
import functools

import jax
import jax.numpy as jnp
from jax.experimental import pallas as pl
from jax.experimental.pallas import tpu as pltpu


def _round_up(x, m):
    return -(-x // m) * m


def _balanced_tile(dim, tile_max, align):
    """Largest tile <= tile_max (multiple of `align`) that splits `dim` into
    near-equal pieces, minimizing padding waste on awkward dims."""
    n_tiles = max(1, -(-dim // tile_max))
    return min(_round_up(-(-dim // n_tiles), align), _round_up(tile_max, align))


# --------------------------------------------------------------------------- #
# Kernels
# --------------------------------------------------------------------------- #
def _linear_kernel_small(x_ref, w_ref, b_ref, o_ref):
    # Single MXU pass: (M,K) @ (K,N) -> (M,N), f32 accumulation, bias add.
    acc = jnp.dot(x_ref[...], w_ref[...], preferred_element_type=jnp.float32)
    o_ref[...] = (acc + b_ref[...]).astype(o_ref.dtype)


def _linear_kernel_tiled(x_ref, w_ref, b_ref, o_ref):
    # Output block is resident across the K axis (same (i, j) for every k), so
    # we accumulate directly into o_ref (f32) — no scratch accumulator needed.
    k = pl.program_id(2)

    @pl.when(k == 0)
    def _():
        o_ref[...] = jnp.zeros_like(o_ref)

    o_ref[...] += jnp.dot(x_ref[...], w_ref[...],
                          preferred_element_type=jnp.float32)

    @pl.when(k == pl.num_programs(2) - 1)
    def _():
        # Bias added exactly once, in the finalize step.
        o_ref[...] += b_ref[...]


# --------------------------------------------------------------------------- #
# Wrappers
# --------------------------------------------------------------------------- #
@jax.jit
def _forward_small(x, w_t, b_row):
    M, K = x.shape
    _, N = w_t.shape
    return pl.pallas_call(
        _linear_kernel_small,
        out_shape=jax.ShapeDtypeStruct((M, N), jnp.float32),
        in_specs=[
            pl.BlockSpec(memory_space=pltpu.MemorySpace.VMEM),
            pl.BlockSpec(memory_space=pltpu.MemorySpace.VMEM),
            pl.BlockSpec(memory_space=pltpu.MemorySpace.VMEM),
        ],
        out_specs=pl.BlockSpec(memory_space=pltpu.MemorySpace.VMEM),
        cost_estimate=pl.CostEstimate(
            flops=2 * M * N * K, transcendentals=0,
            bytes_accessed=4 * (M * K + K * N + M * N + N)),
    )(x, w_t, b_row)


@functools.partial(jax.jit, static_argnames=("tm_max", "tn", "tk", "n_out"))
def _forward_tiled(x, w_pad, b_pad, *, tm_max, tn, tk, n_out):
    M, K = x.shape
    Kp, Np = w_pad.shape

    # Balanced M tile (multiple of 8).  If the parallel (i, j) grid would be
    # 1x1, split M 2-ways so both TensorCores on v7x get work.
    tm = _balanced_tile(M, tm_max, 8)
    Mp = _round_up(M, tm)
    if (Mp // tm) * (Np // tn) == 1 and M > 8:
        tm = _round_up(-(-M // 2), 8)
        Mp = _round_up(M, tm)

    # Only x is padded per call (K remainder zero-padded -> reduction exact);
    # W and bias were padded once at init.
    x_p = x if (Mp, Kp) == (M, K) else jnp.pad(x, ((0, Mp - M), (0, Kp - K)))

    gm, gn, gk = Mp // tm, Np // tn, Kp // tk

    # bytes_accessed includes the tiling re-read factor (x streamed gn times,
    # W streamed gm times).
    bytes_accessed = 4 * (gn * Mp * Kp + gm * Kp * Np + Mp * Np + Np)

    # Explicit VMEM budget: double buffers for x/W/bias/out tiles.  Stays well
    # under v7x's 64 MiB physical VMEM; above v5e's 16 MiB scoped default.
    work_bytes = 4 * 2 * (tm * tk + tk * tn + tm * tn + tn)
    vmem_limit = min(max(2 * work_bytes, 32 * 1024 * 1024), 56 * 1024 * 1024)

    out = pl.pallas_call(
        _linear_kernel_tiled,
        out_shape=jax.ShapeDtypeStruct((Mp, Np), jnp.float32),
        grid_spec=pltpu.PrefetchScalarGridSpec(
            num_scalar_prefetch=0,
            grid=(gm, gn, gk),
            in_specs=[
                pl.BlockSpec((tm, tk), lambda i, j, k: (i, k)),   # x tile
                pl.BlockSpec((tk, tn), lambda i, j, k: (k, j)),   # W tile (K,N)
                pl.BlockSpec((1, tn), lambda i, j, k: (0, j)),    # bias tile
            ],
            out_specs=pl.BlockSpec((tm, tn), lambda i, j, k: (i, j)),
        ),
        compiler_params=pltpu.CompilerParams(
            dimension_semantics=("parallel", "parallel", "arbitrary"),
            vmem_limit_bytes=vmem_limit,
        ),
        cost_estimate=pl.CostEstimate(
            flops=2 * M * n_out * K, transcendentals=0,
            bytes_accessed=bytes_accessed),
    )(x_p, w_pad, b_pad)

    return out if (Mp, Np) == (M, n_out) else out[:M, :n_out]


class SimpleLinearPallas:
    """Pallas TPU forward of nn.Linear(input_dim, output_dim): y = x @ W.T + b."""

    def __init__(self, weight, bias, *, tm_max=512, tn_max=512, tk_max=1024,
                 small_limit=(256, 256, 512)):
        weight = jnp.asarray(weight, jnp.float32)   # (out_dim, in_dim), PyTorch layout
        bias = jnp.asarray(bias, jnp.float32)       # (out_dim,)
        self.out_dim, self.in_dim = weight.shape
        assert bias.shape == (self.out_dim,)
        self.tm_max = tm_max
        self.small_limit = small_limit

        N, K = self.out_dim, self.in_dim

        # ---- one-time parameter layout (hoisted out of the per-call path) ----
        w_t = weight.T                               # (K, N): plain MXU contraction
        self.tn = _balanced_tile(N, tn_max, 128)
        self.tk = _balanced_tile(K, tk_max, 128)
        Np, Kp = _round_up(N, self.tn), _round_up(K, self.tk)

        self.w_small = w_t
        self.b_small = bias.reshape(1, N)
        self.w_pad = (w_t if (Kp, Np) == (K, N)
                      else jnp.pad(w_t, ((0, Kp - K), (0, Np - N))))
        self.b_pad = (bias if Np == N else jnp.pad(bias, (0, Np - N))).reshape(1, Np)

        # TODO(synk): optionally store W in bf16 and feed bf16 MXU operands
        # (~3x MXU throughput, half the HBM bytes) when numerics permit.

    def __call__(self, x):
        x = jnp.asarray(x, jnp.float32)
        M, K = x.shape
        assert K == self.in_dim
        sm, sn, sk = self.small_limit
        if M <= sm and self.out_dim <= sn and K <= sk:
            return _forward_small(x, self.w_small, self.b_small)
        return _forward_tiled(x, self.w_pad, self.b_pad,
                              tm_max=self.tm_max, tn=self.tn, tk=self.tk,
                              n_out=self.out_dim)


if __name__ == "__main__":
    # --- shapes implied by the module: one small Linear layer ---------------
    batch, input_dim, output_dim = 8, 32, 16

    key = jax.random.PRNGKey(0)
    kx, kw, kb = jax.random.split(key, 3)
    bound = 1.0 / (input_dim ** 0.5)                 # mimic nn.Linear init bounds
    x = jax.random.normal(kx, (batch, input_dim), dtype=jnp.float32)
    weight = jax.random.uniform(kw, (output_dim, input_dim),
                                minval=-bound, maxval=bound, dtype=jnp.float32)
    bias = jax.random.uniform(kb, (output_dim,),
                              minval=-bound, maxval=bound, dtype=jnp.float32)

    model = SimpleLinearPallas(weight, bias)
    y = model(x)
    jax.block_until_ready(y)
    y_ref = x @ weight.T + bias
    assert y.shape == (batch, output_dim)
    assert jnp.allclose(y, y_ref, atol=1e-5, rtol=1e-5), "small-path mismatch"

    # --- also exercise the tiled (grid) path at a modest non-aligned shape ---
    M2, K2, N2 = 264, 640, 384
    k1, k2, k3 = jax.random.split(jax.random.PRNGKey(1), 3)
    x2 = jax.random.normal(k1, (M2, K2), dtype=jnp.float32)
    w2 = jax.random.normal(k2, (N2, K2), dtype=jnp.float32) / (K2 ** 0.5)
    b2 = jax.random.normal(k3, (N2,), dtype=jnp.float32)
    model2 = SimpleLinearPallas(w2, b2)
    y2 = model2(x2)
    jax.block_until_ready(y2)
    y2_ref = x2 @ w2.T + b2
    assert y2.shape == (M2, N2)
    assert jnp.allclose(y2, y2_ref, atol=1e-3, rtol=1e-3), "tiled-path mismatch"

    print("KERNEL_OK")
</pallas_src>

<mosaic_0001>
module attributes {stable_mosaic.version = 11 : i64} {
  func.func @_linear_kernel_small(%arg0: memref<8x32xf32, #tpu.memory_space<vmem>>, %arg1: memref<32x16xf32, #tpu.memory_space<vmem>>, %arg2: memref<1x16xf32, #tpu.memory_space<vmem>>, %arg3: memref<8x16xf32, #tpu.memory_space<vmem>>) attributes {dimension_semantics = [], scalar_prefetch = 0 : i64, scratch_operands = 0 : i64, tpu.core_type = #tpu.core_type<tc>} {
    %c0 = arith.constant 0 : index
    %c0_0 = arith.constant 0 : index
    %0 = vector.load %arg0[%c0, %c0_0] : memref<8x32xf32, #tpu.memory_space<vmem>>, vector<8x32xf32>
    %c0_1 = arith.constant 0 : index
    %c0_2 = arith.constant 0 : index
    %1 = vector.load %arg1[%c0_1, %c0_2] : memref<32x16xf32, #tpu.memory_space<vmem>>, vector<32x16xf32>
    %cst = arith.constant dense<0.000000e+00> : vector<8x16xf32>
    %2 = tpu.matmul %0, %1, %cst {dimension_numbers = #tpu.dot_dimension_numbers<[1], [0], [0], [1], [0, 0, 1, 1], [], []>} : vector<8x32xf32>, vector<32x16xf32>, vector<8x16xf32> -> vector<8x16xf32>
    %c0_3 = arith.constant 0 : index
    %c0_4 = arith.constant 0 : index
    %3 = vector.load %arg2[%c0_3, %c0_4] : memref<1x16xf32, #tpu.memory_space<vmem>>, vector<1x16xf32>
    %4 = vector.broadcast %3 : vector<1x16xf32> to vector<8x16xf32>
    %5 = arith.addf %2, %4 : vector<8x16xf32>
    %c0_5 = arith.constant 0 : index
    %c0_6 = arith.constant 0 : index
    %6 = vector.load %arg3[%c0_5, %c0_6] : memref<8x16xf32, #tpu.memory_space<vmem>>, vector<8x16xf32>
    tpu.vector_store %arg3[%c0_5, %c0_6], %5 {strides = array<i32>} : memref<8x16xf32, #tpu.memory_space<vmem>>, vector<8x16xf32>,
    return
  }
}

</mosaic_0001>

<llo_original>
// kernel: _forward_small.1
$region0: #{_forward_small.1}
  #allocation0 [shape = 'u32[]', space=smem, size = 0x4, offset = 0x4, fixed_abs, tag = 'smem constant byte address 0x4 - core index']
  #allocation1 [shape = 'u32[144,128]{1,0:T(1,128)}', space=vmem, size = 0x12000, scoped, tag = 'internal scratch']
  %s0 = inlined_call_operand.vmem [shape: f32[8,32], index: 0, kind: input, shape index: {}]
  %s1 = inlined_call_operand.vmem [shape: f32[32,16], index: 1, kind: input, shape index: {}]
  %s2 = inlined_call_operand.vmem [shape: f32[1,16], index: 2, kind: input, shape index: {}]
  %s3 = inlined_call_operand.hbm [shape: f32[8,16], index: 3, kind: output, shape index: {}]
  %s4 = sld [smem:[#allocation0]]
  $region22: #{_forward_small.1} parent=0
    _
  %s6 = ssub.s32 1, %s4
  %s7 = scalar_select 0, %s6, %s4
  $region1: #{_forward_small.1} parent=0
    #allocation2 [shape = 'u8[4096]{0}', space=vmem, size = 0x1000, scoped, tag = 'output window, operand 0, single buffered']
    #allocation3 [shape = 's32[1]{0}', space=sflag, size = 0x4, scoped, tag = 'scoped memory for _forward_small.1']
    %8 = vsyncpa [#allocation3], 0
    // Predicated region
    $region2: #{_forward_small.1} parent=1 // pred_check
      _
    $region3: #{_forward_small.1} parent=1 // pred_check_branch
      %10 = sbr.rel (0) target = $region5
    $region4: #{_forward_small.1} parent=1 // pred_region
      _
    $region5: #{_forward_small.1} parent=1 // pred_fallthru
      _
    // Predicated region
    $region6: #{_forward_small.1} parent=1 // pred_check
      _
    $region7: #{_forward_small.1} parent=1 // pred_check_branch
      %12 = sbr.rel (0) target = $region9
    $region8: #{_forward_small.1} parent=1 // pred_region
      _
    $region9: #{_forward_small.1} parent=1 // pred_fallthru
      _
    // Predicated region
    $region10: #{_forward_small.1} parent=1 // pred_check
      _
    $region11: #{_forward_small.1} parent=1 // pred_check_branch
      %14 = sbr.rel (0) target = $region13
    $region12: #{_forward_small.1} parent=1 // pred_region
      _
    $region13: #{_forward_small.1} parent=1 // pred_fallthru
      _
    %v15 = vld [vmem:[%s0] sm:$0xff]
    %v16 = vld [vmem:[%s1] sm:$0xff]
    %v17 = vld [vmem:[%s1 + $0x8] sm:$0xff]
    %v18 = vld [vmem:[%s1 + $0x10] sm:$0xff]
    %v19 = vld [vmem:[%s1 + $0x18] sm:$0xff]
    %v20 = vld [vmem:[%s2] sm:$0x1]
    %v22 = vlaneseq
    %v23 = vshrl.u32 %v22, 7
    %v24 = vsub.s32 0, %v23
    %v25 = vrot.slane %v20, %v24
    %vm27 = vcmask 261120
    %v29 = vsel %vm27, %v15, 0
    %31 = vmatprep.subr.mxu0 0.0
    %32 = vmatpush1.msra.mxu0 %v16
    %33 = vmatprep.subr.mxu0 0.0
    %34 = vmatpush1.msra.mxu0 %v17
    %35 = vmatprep.subr.mxu0 0.0
    %36 = vmatpush1.msra.mxu0 %v18
    %37 = vmatprep.subr.mxu0 0.0
    %38 = vmatpush1.msra.mxu0 %v19
    %39 = vmatprep.subr.mxu0 0.0
    %40 = vmatpush1.msra.mxu0 0.0
    %41 = vmatprep.subr.mxu0 0.0
    %42 = vmatpush1.msra.mxu0 0.0
    %43 = vmatprep.subr.mxu0 0.0
    %44 = vmatpush1.msra.mxu0 0.0
    %45 = vmatprep.subr.mxu0 0.0
    %46 = vmatpush1.msra.mxu0 0.0
    %47 = vmatprep.subr.mxu0 0.0
    %48 = vmatpush1.msra.mxu0 0.0
    %49 = vmatprep.subr.mxu0 0.0
    %50 = vmatpush1.msra.mxu0 0.0
    %51 = vmatprep.subr.mxu0 0.0
    %52 = vmatpush1.msra.mxu0 0.0
    %53 = vmatprep.subr.mxu0 0.0
    %54 = vmatpush1.msra.mxu0 0.0
    %55 = vmatprep.subr.mxu0 0.0
    %56 = vmatpush1.msra.mxu0 0.0
    %57 = vmatprep.subr.mxu0 0.0
    %58 = vmatpush1.msra.mxu0 0.0
    %59 = vmatprep.subr.mxu0 0.0
    %60 = vmatpush1.msra.mxu0 0.0
    %61 = vmatprep.subr.mxu0 0.0
    %62 = vmatpush1.msra.mxu0 0.0
    %63 = vmatprep.subr.mxu0 0.0
    %64 = vmatpush1.msra.mxu0 0.0
    %65 = vmatprep.subr.mxu0 0.0
    %66 = vmatpush1.msra.mxu0 0.0
    %67 = vmatprep.subr.mxu0 0.0
    %68 = vmatpush1.msra.mxu0 0.0
    %69 = vmatprep.subr.mxu0 0.0
    %70 = vmatpush1.msra.mxu0 0.0
    %71 = vmatprep.subr.mxu0 0.0
    %72 = vmatpush1.msra.mxu0 0.0
    %73 = vmatprep.subr.mxu0 0.0
    %74 = vmatpush1.msra.mxu0 0.0
    %75 = vmatprep.subr.mxu0 0.0
    %76 = vmatpush1.msra.mxu0 0.0
    %77 = vmatprep.subr.mxu0 0.0
    %78 = vmatpush1.msra.mxu0 0.0
    %79 = vmatprep.subr.mxu0 0.0
    %80 = vmatpush1.msra.mxu0 0.0
    %81 = vmatprep.subr.mxu0 0.0
    %82 = vmatpush1.msra.mxu0 0.0
    %83 = vmatprep.subr.mxu0 0.0
    %84 = vmatpush1.msra.mxu0 0.0
    %85 = vmatprep.subr.mxu0 0.0
    %86 = vmatpush1.msra.mxu0 0.0
    %87 = vmatprep.subr.mxu0 0.0
    %88 = vmatpush1.msra.mxu0 0.0
    %89 = vmatprep.subr.mxu0 0.0
    %90 = vmatpush1.msra.mxu0 0.0
    %91 = vmatprep.subr.mxu0 0.0
    %92 = vmatpush1.msra.mxu0 0.0
    %93 = vmatprep.subr.mxu0 0.0
    %94 = vmatpush1.msra.mxu0 0.0
    %95 = vmatprep.mubr.f32.mxu0 0.0
    %96 = vmatmul.mubr.f32.gmra.mrb[0].mxu0 %v29
    %v97 = vpop.f32.mrb[0].mxu0
    %v98 = vadd.f32 %v25, %v97
    %v99 = vpop.f32.mrb[0].mxu0
    %100 = vdwg.mxu0
    %vm101 = vcmask 130048
    %102 = vst.msk [vmem:[#allocation2] sm:$0xff] %vm101, %v98
    // Predicated region
    $region14: #{_forward_small.1} parent=1 // pred_check
      _
    $region15: #{_forward_small.1} parent=1 // pred_check_branch
      %104 = sbr.rel (0) target = $region17
    $region16: #{_forward_small.1} parent=1 // pred_region
      %s106 = ssub.s32 128, 128
      %107 = vsyncadd [#allocation3], %s106
      %s109 = sshll.u32 [#allocation2], 4
      %s110 = int_to_ptr.vmem [resolvable:$true] %s109
      %112 = dma.vmem_to_hbm [thread:$0]  %s110, 128, %s3, [#allocation3]
    $region17: #{_forward_small.1} parent=1 // pred_fallthru
      _
    // Predicated region
    $region18: #{_forward_small.1} parent=1 // pred_check
      _
    $region19: #{_forward_small.1} parent=1 // pred_check_branch
      %114 = sbr.rel (0) target = $region21
    $region20: #{_forward_small.1} parent=1 // pred_region
      %115 = dma.done [#allocation3], 128
    $region21: #{_forward_small.1} parent=1 // pred_fallthru
      _
    %116 = vsyncpa [#allocation3], 1

</llo_original>
